<compile_context>
chip_gen: v7x
topology: tpu7x:2x2x1
jax: 0.10.0
libtpu: 0.0.40
codegen_flags: <defaults>
</compile_context>

<pallas_src>
import jax
import jax.numpy as jnp
from jax.experimental import pallas as pl
from jax.experimental.pallas import tpu as pltpu


_LANE = 128
_SUBLANE = 8


def _decoder_kernel(z_ref, w_ref, b_ref, out_ref):
    # Linear tile: (tm, K) @ (K, tn) on the MXU — bf16 operands, f32 accumulation.
    z = z_ref[...].astype(jnp.bfloat16)
    acc = jnp.dot(z, w_ref[...], preferred_element_type=jnp.float32)
    acc = acc + b_ref[...]                        # (1, tn) bias broadcast over rows
    # Hardtanh(min_val=-1.0, max_val=1.0)
    out_ref[...] = jnp.clip(acc, -1.0, 1.0).astype(out_ref.dtype)


def _round_up(x, m):
    return ((x + m - 1) // m) * m


def _vmem_capacity_bytes():
    # Generation-aware physical VMEM (v5e/v6e: 128 MiB, v7x: 64 MiB).
    try:
        return int(pltpu.get_tpu_info().vmem_capacity_bytes)
    except Exception:
        return 64 * 1024 * 1024   # conservative fallback


def decoder_forward(z, w, b, *, tm=None, tn=512, out_dtype=None):
    """Decoder.forward: clip(z @ w + b, -1, 1).

    z : (..., in_dim)       activations, streamed in their native dtype
    w : (in_dim, out_dim)   nn.Linear weight pre-transposed to (in, out); pass bf16
                            (cast once at model setup) to avoid a per-call cast pass
    b : (out_dim,)          bias
    tm: rows per tile (auto-sized from the VMEM budget when None)
    tn: output columns per tile (multiple of 128)
    """
    orig_shape = z.shape
    K = orig_shape[-1]
    Kw, N = w.shape
    assert K == Kw, "in_dim mismatch between z and weight"
    if out_dtype is None:
        out_dtype = z.dtype

    z2 = z.reshape(-1, K)                               # no dtype cast in the wrapper
    B = z2.shape[0]

    # MXU wants bf16 weights; keep this a no-op by passing bf16 from model setup.
    w_bf16 = w if w.dtype == jnp.bfloat16 else w.astype(jnp.bfloat16)

    # Lane-dense output: pad out_dim to a multiple of 128 (zero weight cols / bias),
    # slice back afterwards.  Avoids masked vst.msk partial stores.
    N_pad = _round_up(N, _LANE)
    if N_pad != N:
        w_bf16 = jnp.pad(w_bf16, ((0, 0), (0, N_pad - N)))
        b = jnp.pad(b, (0, N_pad - N))
    b2 = b.reshape(1, N_pad).astype(jnp.float32)

    # Column tiling: stream the weight in (K, tn) slabs; second "parallel" grid axis.
    tn_eff = N_pad if N_pad <= tn else tn
    n_col = pl.cdiv(N_pad, tn_eff)

    # Generation-aware VMEM limit and row-tile sizing.
    vmem_cap = _vmem_capacity_bytes()
    vmem_limit = min(vmem_cap - 16 * 1024 * 1024, 100 * 1024 * 1024)
    tile_budget = vmem_limit - 8 * 1024 * 1024
    out_itemsize = jnp.dtype(out_dtype).itemsize
    fixed = 2 * (K * tn_eff * 2 + tn_eff * 4)           # weight + bias, double-buffered
    per_row = 2 * (K * z2.dtype.itemsize + tn_eff * out_itemsize)  # z + out, 2 buffers
    if tm is None:
        avail = max(tile_budget - fixed, per_row)
        tm = min(avail // per_row, 4096)
        if tm >= 256:
            tm = (tm // 256) * 256
        tm = max(tm, _SUBLANE)
    tm = int(tm)

    if B <= tm:
        tm_eff = B                                       # single full-extent row block
    else:
        tm_eff = max(_SUBLANE, (tm // _SUBLANE) * _SUBLANE)
    n_row = pl.cdiv(B, tm_eff)                           # ragged final block handled by Pallas

    cost = pl.CostEstimate(
        flops=2 * B * K * N_pad,
        transcendentals=0,
        bytes_accessed=(B * K * z2.dtype.itemsize + K * N_pad * 2
                        + N_pad * 4 + B * N_pad * out_itemsize),
    )

    out = pl.pallas_call(
        _decoder_kernel,
        out_shape=jax.ShapeDtypeStruct((B, N_pad), out_dtype),
        grid=(n_row, n_col),
        in_specs=[
            pl.BlockSpec((tm_eff, K), lambda i, j: (i, 0)),      # activation row tile
            pl.BlockSpec((K, tn_eff), lambda i, j: (0, j)),      # weight slab
            pl.BlockSpec((1, tn_eff), lambda i, j: (0, j)),      # bias slab
        ],
        out_specs=pl.BlockSpec((tm_eff, tn_eff), lambda i, j: (i, j)),
        compiler_params=pltpu.CompilerParams(
            dimension_semantics=("parallel", "parallel"),
            vmem_limit_bytes=vmem_limit,
        ),
        cost_estimate=cost,
    )(z2, w_bf16, b2)

    if N_pad != N:
        out = out[:, :N]
    return out.reshape(orig_shape[:-1] + (N,))


if __name__ == "__main__":
    key = jax.random.PRNGKey(0)
    k1, k2, k3 = jax.random.split(key, 3)

    # Small point-cloud-decoder-like shapes; out_dim=200 is deliberately NOT a
    # multiple of 128 to exercise the lane-dense padding path.
    B, in_dim, out_dim = 256, 64, 200
    z = jax.random.normal(k1, (B, in_dim), dtype=jnp.float32)
    # torch nn.Linear(in_dim, out_dim) stores weight as (out_dim, in_dim); keep it
    # pre-transposed (in, out) and pre-cast to bf16 ONCE at "model setup".
    w = jax.random.normal(k2, (in_dim, out_dim), dtype=jnp.float32) / (in_dim ** 0.5)
    b = jax.random.normal(k3, (out_dim,), dtype=jnp.float32) * 0.1
    w_bf16 = w.astype(jnp.bfloat16)

    ref = jnp.clip(z @ w_bf16.astype(jnp.float32) + b, -1.0, 1.0)

    # 1) Default auto-tiled path (B <= tm -> single row tile, full-N column block).
    out = jax.block_until_ready(decoder_forward(z, w_bf16, b))
    assert out.shape == (B, out_dim)
    err = float(jnp.max(jnp.abs(out - ref)))
    assert err < 2e-2, f"auto-tile mismatch: max abs err {err}"

    # 2) Multi-tile grid with a ragged final row block (B=300, tm=128 -> 3 row tiles,
    #    last partial; tn=128 -> 2 column tiles) to exercise the no-pad ragged path.
    B2 = 300
    z_big = jax.random.normal(k1, (B2, in_dim), dtype=jnp.float32)
    ref2 = jnp.clip(z_big @ w_bf16.astype(jnp.float32) + b, -1.0, 1.0)
    out2 = jax.block_until_ready(decoder_forward(z_big, w_bf16, b, tm=128, tn=128))
    assert out2.shape == (B2, out_dim)
    err2 = float(jnp.max(jnp.abs(out2 - ref2)))
    assert err2 < 2e-2, f"tiled/ragged mismatch: max abs err {err2}"

    print("KERNEL_OK")
</pallas_src>

<mosaic_0001>
module attributes {stable_mosaic.version = 11 : i64} {
  func.func @_decoder_kernel(%arg0: i32, %arg1: i32, %arg2: memref<256x64xf32, #tpu.memory_space<vmem>>, %arg3: memref<64x256xbf16, #tpu.memory_space<vmem>>, %arg4: memref<1x256xf32, #tpu.memory_space<vmem>>, %arg5: memref<256x256xf32, #tpu.memory_space<vmem>>) attributes {dimension_semantics = [#tpu.dimension_semantics<parallel>, #tpu.dimension_semantics<parallel>], iteration_bounds = array<i64: 1, 1>, scalar_prefetch = 0 : i64, scratch_operands = 0 : i64, tpu.core_type = #tpu.core_type<tc>, window_params = [{transform_indices = @transform_0, window_bounds = array<i64: 256, 64>}, {transform_indices = @transform_1, window_bounds = array<i64: 64, 256>}, {transform_indices = @transform_2, window_bounds = array<i64: 1, 256>}, {transform_indices = @transform_3, window_bounds = array<i64: 256, 256>}]} {
    %c0 = arith.constant 0 : index
    %c0_0 = arith.constant 0 : index
    %0 = vector.load %arg2[%c0, %c0_0] : memref<256x64xf32, #tpu.memory_space<vmem>>, vector<256x64xf32>
    %1 = arith.truncf %0 : vector<256x64xf32> to vector<256x64xbf16>
    %c0_1 = arith.constant 0 : index
    %c0_2 = arith.constant 0 : index
    %2 = vector.load %arg3[%c0_1, %c0_2] : memref<64x256xbf16, #tpu.memory_space<vmem>>, vector<64x256xbf16>
    %cst = arith.constant dense<0.000000e+00> : vector<256x256xf32>
    %3 = tpu.matmul %1, %2, %cst {dimension_numbers = #tpu.dot_dimension_numbers<[1], [0], [0], [1], [0, 0, 1, 1], [], []>} : vector<256x64xbf16>, vector<64x256xbf16>, vector<256x256xf32> -> vector<256x256xf32>
    %c0_3 = arith.constant 0 : index
    %c0_4 = arith.constant 0 : index
    %4 = vector.load %arg4[%c0_3, %c0_4] : memref<1x256xf32, #tpu.memory_space<vmem>>, vector<1x256xf32>
    %5 = vector.broadcast %4 : vector<1x256xf32> to vector<256x256xf32>
    %6 = arith.addf %3, %5 : vector<256x256xf32>
    %cst_5 = arith.constant -1.000000e+00 : f32
    %cst_6 = arith.constant 1.000000e+00 : f32
    %7 = vector.broadcast %cst_5 : f32 to vector<256x256xf32>
    %8 = arith.maximumf %7, %6 : vector<256x256xf32>
    %9 = vector.broadcast %cst_6 : f32 to vector<256x256xf32>
    %10 = arith.minimumf %9, %8 : vector<256x256xf32>
    %c0_7 = arith.constant 0 : index
    %c0_8 = arith.constant 0 : index
    %11 = vector.load %arg5[%c0_7, %c0_8] : memref<256x256xf32, #tpu.memory_space<vmem>>, vector<256x256xf32>
    tpu.vector_store %arg5[%c0_7, %c0_8], %10 {strides = array<i32>} : memref<256x256xf32, #tpu.memory_space<vmem>>, vector<256x256xf32>,
    return
  }
  func.func @transform_0(%arg0: i32, %arg1: i32) -> (i32, i32) {
    %c0_i32 = arith.constant 0 : i32
    %c0_i32_0 = arith.constant 0 : i32
    return %arg0, %c0_i32 : i32, i32
  }
  func.func @transform_1(%arg0: i32, %arg1: i32) -> (i32, i32) {
    %c0_i32 = arith.constant 0 : i32
    %c0_i32_0 = arith.constant 0 : i32
    return %c0_i32, %arg1 : i32, i32
  }
  func.func @transform_2(%arg0: i32, %arg1: i32) -> (i32, i32) {
    %c0_i32 = arith.constant 0 : i32
    %c0_i32_0 = arith.constant 0 : i32
    return %c0_i32, %arg1 : i32, i32
  }
  func.func @transform_3(%arg0: i32, %arg1: i32) -> (i32, i32) {
    %c0_i32 = arith.constant 0 : i32
    return %arg0, %arg1 : i32, i32
  }
}

</mosaic_0001>

<llo_original>
// kernel: tpu_custom_call.1
$region0: #{tpu_custom_call.1}
  #allocation0 [shape = 'u32[]', space=smem, size = 0x4, offset = 0x4, fixed_abs, tag = 'smem constant byte address 0x4 - core index']
  #allocation1 [shape = 'u32[144,128]{1,0:T(1,128)}', space=vmem, size = 0x12000, scoped, tag = 'internal scratch']
  %s0 = inlined_call_operand.vmem [shape: f32[256,64], index: 0, kind: input, shape index: {}]
  %s1 = inlined_call_operand.vmem [shape: bf16[64,256], index: 1, kind: input, shape index: {}]
  %s2 = inlined_call_operand.vmem [shape: f32[1,256], index: 2, kind: input, shape index: {}]
  %s3 = inlined_call_operand.hbm [shape: f32[256,256], index: 3, kind: output, shape index: {}]
  %s4 = sld [smem:[#allocation0]]
  $region22: #{tpu_custom_call.1} parent=0
    _
  %s6 = ssub.s32 1, %s4
  %s7 = scalar_select 0, %s6, %s4
  $region1: #{tpu_custom_call.1} parent=0
    #allocation2 [shape = 'u8[262144]{0}', space=vmem, size = 0x40000, scoped, tag = 'output window, operand 0, single buffered']
    #allocation3 [shape = 's32[1]{0}', space=sflag, size = 0x4, scoped, tag = 'scoped memory for tpu_custom_call.1']
    %8 = vsyncpa [#allocation3], 0
    // Predicated region
    $region2: #{tpu_custom_call.1} parent=1 // pred_check
      _
    $region3: #{tpu_custom_call.1} parent=1 // pred_check_branch
      %10 = sbr.rel (0) target = $region5
    $region4: #{tpu_custom_call.1} parent=1 // pred_region
      _
    $region5: #{tpu_custom_call.1} parent=1 // pred_fallthru
      _
    // Predicated region
    $region6: #{tpu_custom_call.1} parent=1 // pred_check
      _
    $region7: #{tpu_custom_call.1} parent=1 // pred_check_branch
      %12 = sbr.rel (0) target = $region9
    $region8: #{tpu_custom_call.1} parent=1 // pred_region
      _
    $region9: #{tpu_custom_call.1} parent=1 // pred_fallthru
      _
    // Predicated region
    $region10: #{tpu_custom_call.1} parent=1 // pred_check
      _
    $region11: #{tpu_custom_call.1} parent=1 // pred_check_branch
      %14 = sbr.rel (0) target = $region13
    $region12: #{tpu_custom_call.1} parent=1 // pred_region
      _
    $region13: #{tpu_custom_call.1} parent=1 // pred_fallthru
      _
    %v16 = vld [vmem:[%s0] sm:$0xff]
    %v17 = vld [vmem:[%s0 + $0x8] sm:$0xff]
    %v18 = vld [vmem:[%s0 + $0x10] sm:$0xff]
    %v19 = vld [vmem:[%s0 + $0x18] sm:$0xff]
    %v20 = vld [vmem:[%s0 + $0x20] sm:$0xff]
    %v21 = vld [vmem:[%s0 + $0x28] sm:$0xff]
    %v22 = vld [vmem:[%s0 + $0x30] sm:$0xff]
    %v23 = vld [vmem:[%s0 + $0x38] sm:$0xff]
    %v24 = vld [vmem:[%s0 + $0x40] sm:$0xff]
    %v25 = vld [vmem:[%s0 + $0x48] sm:$0xff]
    %v26 = vld [vmem:[%s0 + $0x50] sm:$0xff]
    %v27 = vld [vmem:[%s0 + $0x58] sm:$0xff]
    %v28 = vld [vmem:[%s0 + $0x60] sm:$0xff]
    %v29 = vld [vmem:[%s0 + $0x68] sm:$0xff]
    %v30 = vld [vmem:[%s0 + $0x70] sm:$0xff]
    %v31 = vld [vmem:[%s0 + $0x78] sm:$0xff]
    %v32 = vld [vmem:[%s0 + $0x80] sm:$0xff]
    %v33 = vld [vmem:[%s0 + $0x88] sm:$0xff]
    %v34 = vld [vmem:[%s0 + $0x90] sm:$0xff]
    %v35 = vld [vmem:[%s0 + $0x98] sm:$0xff]
    %v36 = vld [vmem:[%s0 + $0xa0] sm:$0xff]
    %v37 = vld [vmem:[%s0 + $0xa8] sm:$0xff]
    %v38 = vld [vmem:[%s0 + $0xb0] sm:$0xff]
    %v39 = vld [vmem:[%s0 + $0xb8] sm:$0xff]
    %v40 = vld [vmem:[%s0 + $0xc0] sm:$0xff]
    %v41 = vld [vmem:[%s0 + $0xc8] sm:$0xff]
    %v42 = vld [vmem:[%s0 + $0xd0] sm:$0xff]
    %v43 = vld [vmem:[%s0 + $0xd8] sm:$0xff]
    %v44 = vld [vmem:[%s0 + $0xe0] sm:$0xff]
    %v45 = vld [vmem:[%s0 + $0xe8] sm:$0xff]
    %v46 = vld [vmem:[%s0 + $0xf0] sm:$0xff]
    %v47 = vld [vmem:[%s0 + $0xf8] sm:$0xff]
    %v48 = vpack.c.bf16 %v17, %v16
    %v49 = vpack.c.bf16 %v19, %v18
    %v50 = vpack.c.bf16 %v21, %v20
    %v51 = vpack.c.bf16 %v23, %v22
    %v52 = vpack.c.bf16 %v25, %v24
    %v53 = vpack.c.bf16 %v27, %v26
    %v54 = vpack.c.bf16 %v29, %v28
    %v55 = vpack.c.bf16 %v31, %v30
    %v56 = vpack.c.bf16 %v33, %v32
    %v57 = vpack.c.bf16 %v35, %v34
    %v58 = vpack.c.bf16 %v37, %v36
    %v59 = vpack.c.bf16 %v39, %v38
    %v60 = vpack.c.bf16 %v41, %v40
    %v61 = vpack.c.bf16 %v43, %v42
    %v62 = vpack.c.bf16 %v45, %v44
    %v63 = vpack.c.bf16 %v47, %v46
    %v64 = vld [vmem:[%s1] sm:$0xff]
    %v65 = vld [vmem:[%s1 + $0x8] sm:$0xff]
    %v66 = vld [vmem:[%s1 + $0x10] sm:$0xff]
    %v67 = vld [vmem:[%s1 + $0x18] sm:$0xff]
    %v68 = vld [vmem:[%s1 + $0x20] sm:$0xff]
    %v69 = vld [vmem:[%s1 + $0x28] sm:$0xff]
    %v70 = vld [vmem:[%s1 + $0x30] sm:$0xff]
    %v71 = vld [vmem:[%s1 + $0x38] sm:$0xff]
    %v72 = vld [vmem:[%s2] sm:$0x3]
    %v74 = vlaneseq
    %v75 = vshrl.u32 %v74, 7
    %v76 = vsub.s32 0, %v75
    %v77 = vrot.slane %v72, %v76
    %v78 = vlaneseq
    %v79 = vshrl.u32 %v78, 7
    %v80 = vsub.s32 1, %v79
    %v81 = vrot.slane %v72, %v80
    %v92 = vunpack.c.l.b16 %v64
    %v93 = vunpack.c.h.b16 %v64
    %v94 = vunpack.c.l.b16 %v65
    %v95 = vunpack.c.h.b16 %v65
    %v96 = vunpack.c.l.b16 %v66
    %v97 = vunpack.c.h.b16 %v66
    %v98 = vunpack.c.l.b16 %v67
    %v99 = vunpack.c.h.b16 %v67
    %v100 = vunpack.c.l.b16 %v68
    %v101 = vunpack.c.h.b16 %v68
    %v102 = vunpack.c.l.b16 %v69
    %v103 = vunpack.c.h.b16 %v69
    %v104 = vunpack.c.l.b16 %v70
    %v105 = vunpack.c.h.b16 %v70
    %v106 = vunpack.c.l.b16 %v71
    %v107 = vunpack.c.h.b16 %v71
    %v108 = vpack.c.b16 %v94, %v92
    %v109 = vpack.c.b16 %v95, %v93
    %v110 = vpack.c.b16 %v98, %v96
    %v111 = vpack.c.b16 %v99, %v97
    %v112 = vpack.c.b16 %v102, %v100
    %v113 = vpack.c.b16 %v103, %v101
    %v114 = vpack.c.b16 %v106, %v104
    %v115 = vpack.c.b16 %v107, %v105
    %vm124 = vcmask 523264
    %v126 = vsel %vm124, %v48, 0
    %v129 = vsel %vm124, %v49, 0
    %v132 = vsel %vm124, %v50, 0
    %v135 = vsel %vm124, %v51, 0
    %v138 = vsel %vm124, %v52, 0
    %v141 = vsel %vm124, %v53, 0
    %v144 = vsel %vm124, %v54, 0
    %v147 = vsel %vm124, %v55, 0
    %v150 = vsel %vm124, %v56, 0
    %v153 = vsel %vm124, %v57, 0
    %v156 = vsel %vm124, %v58, 0
    %v159 = vsel %vm124, %v59, 0
    %v162 = vsel %vm124, %v60, 0
    %v165 = vsel %vm124, %v61, 0
    %v168 = vsel %vm124, %v62, 0
    %v171 = vsel %vm124, %v63, 0
    %173 = vmatprep.subr.bf16.mxu0 %v109
    %174 = vmatpush1.bf16.msra.mxu0 %v108
    %175 = vmatprep.subr.bf16.mxu0 %v111
    %176 = vmatpush1.bf16.msra.mxu0 %v110
    %177 = vmatprep.subr.bf16.mxu0 %v113
    %178 = vmatpush1.bf16.msra.mxu0 %v112
    %179 = vmatprep.subr.bf16.mxu0 %v115
    %180 = vmatpush1.bf16.msra.mxu0 %v114
    %181 = vmatprep.subr.bf16.mxu0 0
    %182 = vmatpush1.bf16.msra.mxu0 0
    %183 = vmatprep.subr.bf16.mxu0 0
    %184 = vmatpush1.bf16.msra.mxu0 0
    %185 = vmatprep.subr.bf16.mxu0 0
    %186 = vmatpush1.bf16.msra.mxu0 0
    %187 = vmatprep.subr.bf16.mxu0 0
    %188 = vmatpush1.bf16.msra.mxu0 0
    %189 = vmatprep.subr.bf16.mxu0 0
    %190 = vmatpush1.bf16.msra.mxu0 0
    %191 = vmatprep.subr.bf16.mxu0 0
    %192 = vmatpush1.bf16.msra.mxu0 0
    %193 = vmatprep.subr.bf16.mxu0 0
    %194 = vmatpush1.bf16.msra.mxu0 0
    %195 = vmatprep.subr.bf16.mxu0 0
    %196 = vmatpush1.bf16.msra.mxu0 0
    %197 = vmatprep.subr.bf16.mxu0 0
    %198 = vmatpush1.bf16.msra.mxu0 0
    %199 = vmatprep.subr.bf16.mxu0 0
    %200 = vmatpush1.bf16.msra.mxu0 0
    %201 = vmatprep.subr.bf16.mxu0 0
    %202 = vmatpush1.bf16.msra.mxu0 0
    %203 = vmatprep.subr.bf16.mxu0 0
    %204 = vmatpush1.bf16.msra.mxu0 0
    %205 = vmatprep.mubr.bf16.mxu0 0
    %206 = vmatmul.mubr.bf16.gmra.mrb[0].mxu0 %v126
    %v207 = vpop.f32.mrb[0].mxu0
    %v208 = vadd.f32 %v77, %v207
    %v209 = vpop.f32.mrb[0].mxu0
    %v210 = vadd.f32 %v81, %v209
    %v211 = vpop.f32.mrb[0].mxu0
    %v212 = vadd.f32 %v77, %v211
    %v213 = vpop.f32.mrb[0].mxu0
    %v214 = vadd.f32 %v81, %v213
    %215 = vmatprep.mubr.bf16.mxu0 0
    %216 = vmatmul.mubr.bf16.gmra.mrb[0].mxu0 %v129
    %v217 = vpop.f32.mrb[0].mxu0
    %v218 = vadd.f32 %v77, %v217
    %v219 = vpop.f32.mrb[0].mxu0
    %v220 = vadd.f32 %v81, %v219
    %v221 = vpop.f32.mrb[0].mxu0
    %v222 = vadd.f32 %v77, %v221
    %v223 = vpop.f32.mrb[0].mxu0
    %v224 = vadd.f32 %v81, %v223
    %225 = vmatprep.mubr.bf16.mxu0 0
    %226 = vmatmul.mubr.bf16.gmra.mrb[0].mxu0 %v132
    %v227 = vpop.f32.mrb[0].mxu0
    %v228 = vadd.f32 %v77, %v227
    %v229 = vpop.f32.mrb[0].mxu0
    %v230 = vadd.f32 %v81, %v229
    %v231 = vpop.f32.mrb[0].mxu0
    %v232 = vadd.f32 %v77, %v231
    %v233 = vpop.f32.mrb[0].mxu0
    %v234 = vadd.f32 %v81, %v233
    %235 = vmatprep.mubr.bf16.mxu0 0
    %236 = vmatmul.mubr.bf16.gmra.mrb[0].mxu0 %v135
    %v237 = vpop.f32.mrb[0].mxu0
    %v238 = vadd.f32 %v77, %v237
    %v239 = vpop.f32.mrb[0].mxu0
    %v240 = vadd.f32 %v81, %v239
    %v241 = vpop.f32.mrb[0].mxu0
    %v242 = vadd.f32 %v77, %v241
    %v243 = vpop.f32.mrb[0].mxu0
    %v244 = vadd.f32 %v81, %v243
    %245 = vmatprep.mubr.bf16.mxu0 0
    %246 = vmatmul.mubr.bf16.gmra.mrb[0].mxu0 %v138
    %v247 = vpop.f32.mrb[0].mxu0
    %v248 = vadd.f32 %v77, %v247
    %v249 = vpop.f32.mrb[0].mxu0
    %v250 = vadd.f32 %v81, %v249
    %v251 = vpop.f32.mrb[0].mxu0
    %v252 = vadd.f32 %v77, %v251
    %v253 = vpop.f32.mrb[0].mxu0
    %v254 = vadd.f32 %v81, %v253
    %255 = vmatprep.mubr.bf16.mxu0 0
    %256 = vmatmul.mubr.bf16.gmra.mrb[0].mxu0 %v141
    %v257 = vpop.f32.mrb[0].mxu0
    %v258 = vadd.f32 %v77, %v257
    %v259 = vpop.f32.mrb[0].mxu0
    %v260 = vadd.f32 %v81, %v259
    %v261 = vpop.f32.mrb[0].mxu0
    %v262 = vadd.f32 %v77, %v261
    %v263 = vpop.f32.mrb[0].mxu0
    %v264 = vadd.f32 %v81, %v263
    %265 = vmatprep.mubr.bf16.mxu0 0
    %266 = vmatmul.mubr.bf16.gmra.mrb[0].mxu0 %v144
    %v267 = vpop.f32.mrb[0].mxu0
    %v268 = vadd.f32 %v77, %v267
    %v269 = vpop.f32.mrb[0].mxu0
    %v270 = vadd.f32 %v81, %v269
    %v271 = vpop.f32.mrb[0].mxu0
    %v272 = vadd.f32 %v77, %v271
    %v273 = vpop.f32.mrb[0].mxu0
    %v274 = vadd.f32 %v81, %v273
    %275 = vmatprep.mubr.bf16.mxu0 0
    %276 = vmatmul.mubr.bf16.gmra.mrb[0].mxu0 %v147
    %v277 = vpop.f32.mrb[0].mxu0
    %v278 = vadd.f32 %v77, %v277
    %v279 = vpop.f32.mrb[0].mxu0
    %v280 = vadd.f32 %v81, %v279
    %v281 = vpop.f32.mrb[0].mxu0
    %v282 = vadd.f32 %v77, %v281
    %v283 = vpop.f32.mrb[0].mxu0
    %v284 = vadd.f32 %v81, %v283
    %285 = vmatprep.mubr.bf16.mxu0 0
    %286 = vmatmul.mubr.bf16.gmra.mrb[0].mxu0 %v150
    %v287 = vpop.f32.mrb[0].mxu0
    %v288 = vadd.f32 %v77, %v287
    %v289 = vpop.f32.mrb[0].mxu0
    %v290 = vadd.f32 %v81, %v289
    %v291 = vpop.f32.mrb[0].mxu0
    %v292 = vadd.f32 %v77, %v291
    %v293 = vpop.f32.mrb[0].mxu0
    %v294 = vadd.f32 %v81, %v293
    %295 = vmatprep.mubr.bf16.mxu0 0
    %296 = vmatmul.mubr.bf16.gmra.mrb[0].mxu0 %v153
    %v297 = vpop.f32.mrb[0].mxu0
    %v298 = vadd.f32 %v77, %v297
    %v299 = vpop.f32.mrb[0].mxu0
    %v300 = vadd.f32 %v81, %v299
    %v301 = vpop.f32.mrb[0].mxu0
    %v302 = vadd.f32 %v77, %v301
    %v303 = vpop.f32.mrb[0].mxu0
    %v304 = vadd.f32 %v81, %v303
    %305 = vmatprep.mubr.bf16.mxu0 0
    %306 = vmatmul.mubr.bf16.gmra.mrb[0].mxu0 %v156
    %v307 = vpop.f32.mrb[0].mxu0
    %v308 = vadd.f32 %v77, %v307
    %v309 = vpop.f32.mrb[0].mxu0
    %v310 = vadd.f32 %v81, %v309
    %v311 = vpop.f32.mrb[0].mxu0
    %v312 = vadd.f32 %v77, %v311
    %v313 = vpop.f32.mrb[0].mxu0
    %v314 = vadd.f32 %v81, %v313
    %315 = vmatprep.mubr.bf16.mxu0 0
    %316 = vmatmul.mubr.bf16.gmra.mrb[0].mxu0 %v159
    %v317 = vpop.f32.mrb[0].mxu0
    %v318 = vadd.f32 %v77, %v317
    %v319 = vpop.f32.mrb[0].mxu0
    %v320 = vadd.f32 %v81, %v319
    %v321 = vpop.f32.mrb[0].mxu0
    %v322 = vadd.f32 %v77, %v321
    %v323 = vpop.f32.mrb[0].mxu0
    %v324 = vadd.f32 %v81, %v323
    %325 = vmatprep.mubr.bf16.mxu0 0
    %326 = vmatmul.mubr.bf16.gmra.mrb[0].mxu0 %v162
    %v327 = vpop.f32.mrb[0].mxu0
    %v328 = vadd.f32 %v77, %v327
    %v329 = vpop.f32.mrb[0].mxu0
    %v330 = vadd.f32 %v81, %v329
    %v331 = vpop.f32.mrb[0].mxu0
    %v332 = vadd.f32 %v77, %v331
    %v333 = vpop.f32.mrb[0].mxu0
    %v334 = vadd.f32 %v81, %v333
    %335 = vmatprep.mubr.bf16.mxu0 0
    %336 = vmatmul.mubr.bf16.gmra.mrb[0].mxu0 %v165
    %v337 = vpop.f32.mrb[0].mxu0
    %v338 = vadd.f32 %v77, %v337
    %v339 = vpop.f32.mrb[0].mxu0
    %v340 = vadd.f32 %v81, %v339
    %v341 = vpop.f32.mrb[0].mxu0
    %v342 = vadd.f32 %v77, %v341
    %v343 = vpop.f32.mrb[0].mxu0
    %v344 = vadd.f32 %v81, %v343
    %345 = vmatprep.mubr.bf16.mxu0 0
    %346 = vmatmul.mubr.bf16.gmra.mrb[0].mxu0 %v168
    %v347 = vpop.f32.mrb[0].mxu0
    %v348 = vadd.f32 %v77, %v347
    %v349 = vpop.f32.mrb[0].mxu0
    %v350 = vadd.f32 %v81, %v349
    %v351 = vpop.f32.mrb[0].mxu0
    %v352 = vadd.f32 %v77, %v351
    %v353 = vpop.f32.mrb[0].mxu0
    %v354 = vadd.f32 %v81, %v353
    %355 = vmatprep.mubr.bf16.mxu0 0
    %356 = vmatmul.mubr.bf16.gmra.mrb[0].mxu0 %v171
    %v357 = vpop.f32.mrb[0].mxu0
    %v358 = vadd.f32 %v77, %v357
    %v359 = vpop.f32.mrb[0].mxu0
    %v360 = vadd.f32 %v81, %v359
    %v361 = vpop.f32.mrb[0].mxu0
    %v362 = vadd.f32 %v77, %v361
    %v363 = vpop.f32.mrb[0].mxu0
    %v364 = vadd.f32 %v81, %v363
    %365 = vdwg.mxu0
    %v366 = vmax.f32 %v208, -1.0
    %v367 = vmax.f32 %v210, -1.0
    %v368 = vmax.f32 %v212, -1.0
    %v369 = vmax.f32 %v214, -1.0
    %v370 = vmax.f32 %v218, -1.0
    %v371 = vmax.f32 %v220, -1.0
    %v372 = vmax.f32 %v222, -1.0
    %v373 = vmax.f32 %v224, -1.0
    %v374 = vmax.f32 %v228, -1.0
    %v375 = vmax.f32 %v230, -1.0
    %v376 = vmax.f32 %v232, -1.0
    %v377 = vmax.f32 %v234, -1.0
    %v378 = vmax.f32 %v238, -1.0
    %v379 = vmax.f32 %v240, -1.0
    %v380 = vmax.f32 %v242, -1.0
    %v381 = vmax.f32 %v244, -1.0
    %v382 = vmax.f32 %v248, -1.0
    %v383 = vmax.f32 %v250, -1.0
    %v384 = vmax.f32 %v252, -1.0
    %v385 = vmax.f32 %v254, -1.0
    %v386 = vmax.f32 %v258, -1.0
    %v387 = vmax.f32 %v260, -1.0
    %v388 = vmax.f32 %v262, -1.0
    %v389 = vmax.f32 %v264, -1.0
    %v390 = vmax.f32 %v268, -1.0
    %v391 = vmax.f32 %v270, -1.0
    %v392 = vmax.f32 %v272, -1.0
    %v393 = vmax.f32 %v274, -1.0
    %v394 = vmax.f32 %v278, -1.0
    %v395 = vmax.f32 %v280, -1.0
    %v396 = vmax.f32 %v282, -1.0
    %v397 = vmax.f32 %v284, -1.0
    %v398 = vmax.f32 %v288, -1.0
    %v399 = vmax.f32 %v290, -1.0
    %v400 = vmax.f32 %v292, -1.0
    %v401 = vmax.f32 %v294, -1.0
    %v402 = vmax.f32 %v298, -1.0
    %v403 = vmax.f32 %v300, -1.0
    %v404 = vmax.f32 %v302, -1.0
    %v405 = vmax.f32 %v304, -1.0
    %v406 = vmax.f32 %v308, -1.0
    %v407 = vmax.f32 %v310, -1.0
    %v408 = vmax.f32 %v312, -1.0
    %v409 = vmax.f32 %v314, -1.0
    %v410 = vmax.f32 %v318, -1.0
    %v411 = vmax.f32 %v320, -1.0
    %v412 = vmax.f32 %v322, -1.0
    %v413 = vmax.f32 %v324, -1.0
    %v414 = vmax.f32 %v328, -1.0
    %v415 = vmax.f32 %v330, -1.0
    %v416 = vmax.f32 %v332, -1.0
    %v417 = vmax.f32 %v334, -1.0
    %v418 = vmax.f32 %v338, -1.0
    %v419 = vmax.f32 %v340, -1.0
    %v420 = vmax.f32 %v342, -1.0
    %v421 = vmax.f32 %v344, -1.0
    %v422 = vmax.f32 %v348, -1.0
    %v423 = vmax.f32 %v350, -1.0
    %v424 = vmax.f32 %v352, -1.0
    %v425 = vmax.f32 %v354, -1.0
    %v426 = vmax.f32 %v358, -1.0
    %v427 = vmax.f32 %v360, -1.0
    %v428 = vmax.f32 %v362, -1.0
    %v429 = vmax.f32 %v364, -1.0
    %v430 = vmin.f32 %v366, 1.0
    %v431 = vmin.f32 %v367, 1.0
    %v432 = vmin.f32 %v368, 1.0
    %v433 = vmin.f32 %v369, 1.0
    %v434 = vmin.f32 %v370, 1.0
    %v435 = vmin.f32 %v371, 1.0
    %v436 = vmin.f32 %v372, 1.0
    %v437 = vmin.f32 %v373, 1.0
    %v438 = vmin.f32 %v374, 1.0
    %v439 = vmin.f32 %v375, 1.0
    %v440 = vmin.f32 %v376, 1.0
    %v441 = vmin.f32 %v377, 1.0
    %v442 = vmin.f32 %v378, 1.0
    %v443 = vmin.f32 %v379, 1.0
    %v444 = vmin.f32 %v380, 1.0
    %v445 = vmin.f32 %v381, 1.0
    %v446 = vmin.f32 %v382, 1.0
    %v447 = vmin.f32 %v383, 1.0
    %v448 = vmin.f32 %v384, 1.0
    %v449 = vmin.f32 %v385, 1.0
    %v450 = vmin.f32 %v386, 1.0
    %v451 = vmin.f32 %v387, 1.0
    %v452 = vmin.f32 %v388, 1.0
    %v453 = vmin.f32 %v389, 1.0
    %v454 = vmin.f32 %v390, 1.0
    %v455 = vmin.f32 %v391, 1.0
    %v456 = vmin.f32 %v392, 1.0
    %v457 = vmin.f32 %v393, 1.0
    %v458 = vmin.f32 %v394, 1.0
    %v459 = vmin.f32 %v395, 1.0
    %v460 = vmin.f32 %v396, 1.0
    %v461 = vmin.f32 %v397, 1.0
    %v462 = vmin.f32 %v398, 1.0
    %v463 = vmin.f32 %v399, 1.0
    %v464 = vmin.f32 %v400, 1.0
    %v465 = vmin.f32 %v401, 1.0
    %v466 = vmin.f32 %v402, 1.0
    %v467 = vmin.f32 %v403, 1.0
    %v468 = vmin.f32 %v404, 1.0
    %v469 = vmin.f32 %v405, 1.0
    %v470 = vmin.f32 %v406, 1.0
    %v471 = vmin.f32 %v407, 1.0
    %v472 = vmin.f32 %v408, 1.0
    %v473 = vmin.f32 %v409, 1.0
    %v474 = vmin.f32 %v410, 1.0
    %v475 = vmin.f32 %v411, 1.0
    %v476 = vmin.f32 %v412, 1.0
    %v477 = vmin.f32 %v413, 1.0
    %v478 = vmin.f32 %v414, 1.0
    %v479 = vmin.f32 %v415, 1.0
    %v480 = vmin.f32 %v416, 1.0
    %v481 = vmin.f32 %v417, 1.0
    %v482 = vmin.f32 %v418, 1.0
    %v483 = vmin.f32 %v419, 1.0
    %v484 = vmin.f32 %v420, 1.0
    %v485 = vmin.f32 %v421, 1.0
    %v486 = vmin.f32 %v422, 1.0
    %v487 = vmin.f32 %v423, 1.0
    %v488 = vmin.f32 %v424, 1.0
    %v489 = vmin.f32 %v425, 1.0
    %v490 = vmin.f32 %v426, 1.0
    %v491 = vmin.f32 %v427, 1.0
    %v492 = vmin.f32 %v428, 1.0
    %v493 = vmin.f32 %v429, 1.0
    %494 = vst [vmem:[#allocation2] sm:$0xff] %v430
    %495 = vst [vmem:[#allocation2 + $0x8] sm:$0xff] %v431
    %496 = vst [vmem:[#allocation2 + $0x10] sm:$0xff] %v432
    %497 = vst [vmem:[#allocation2 + $0x18] sm:$0xff] %v433
    %498 = vst [vmem:[#allocation2 + $0x20] sm:$0xff] %v434
    %499 = vst [vmem:[#allocation2 + $0x28] sm:$0xff] %v435
    %500 = vst [vmem:[#allocation2 + $0x30] sm:$0xff] %v436
    %501 = vst [vmem:[#allocation2 + $0x38] sm:$0xff] %v437
    %502 = vst [vmem:[#allocation2 + $0x40] sm:$0xff] %v438
    %503 = vst [vmem:[#allocation2 + $0x48] sm:$0xff] %v439
    %504 = vst [vmem:[#allocation2 + $0x50] sm:$0xff] %v440
    %505 = vst [vmem:[#allocation2 + $0x58] sm:$0xff] %v441
    %506 = vst [vmem:[#allocation2 + $0x60] sm:$0xff] %v442
    %507 = vst [vmem:[#allocation2 + $0x68] sm:$0xff] %v443
    %508 = vst [vmem:[#allocation2 + $0x70] sm:$0xff] %v444
    %509 = vst [vmem:[#allocation2 + $0x78] sm:$0xff] %v445
    %510 = vst [vmem:[#allocation2 + $0x80] sm:$0xff] %v446
    %511 = vst [vmem:[#allocation2 + $0x88] sm:$0xff] %v447
    %512 = vst [vmem:[#allocation2 + $0x90] sm:$0xff] %v448
    %513 = vst [vmem:[#allocation2 + $0x98] sm:$0xff] %v449
    %514 = vst [vmem:[#allocation2 + $0xa0] sm:$0xff] %v450
    %515 = vst [vmem:[#allocation2 + $0xa8] sm:$0xff] %v451
    %516 = vst [vmem:[#allocation2 + $0xb0] sm:$0xff] %v452
    %517 = vst [vmem:[#allocation2 + $0xb8] sm:$0xff] %v453
    %518 = vst [vmem:[#allocation2 + $0xc0] sm:$0xff] %v454
    %519 = vst [vmem:[#allocation2 + $0xc8] sm:$0xff] %v455
    %520 = vst [vmem:[#allocation2 + $0xd0] sm:$0xff] %v456
    %521 = vst [vmem:[#allocation2 + $0xd8] sm:$0xff] %v457
    %522 = vst [vmem:[#allocation2 + $0xe0] sm:$0xff] %v458
    %523 = vst [vmem:[#allocation2 + $0xe8] sm:$0xff] %v459
    %524 = vst [vmem:[#allocation2 + $0xf0] sm:$0xff] %v460
    %525 = vst [vmem:[#allocation2 + $0xf8] sm:$0xff] %v461
    %526 = vst [vmem:[#allocation2 + $0x100] sm:$0xff] %v462
    %527 = vst [vmem:[#allocation2 + $0x108] sm:$0xff] %v463
    %528 = vst [vmem:[#allocation2 + $0x110] sm:$0xff] %v464
    %529 = vst [vmem:[#allocation2 + $0x118] sm:$0xff] %v465
    %530 = vst [vmem:[#allocation2 + $0x120] sm:$0xff] %v466
    %531 = vst [vmem:[#allocation2 + $0x128] sm:$0xff] %v467
    %532 = vst [vmem:[#allocation2 + $0x130] sm:$0xff] %v468
    %533 = vst [vmem:[#allocation2 + $0x138] sm:$0xff] %v469
    %534 = vst [vmem:[#allocation2 + $0x140] sm:$0xff] %v470
    %535 = vst [vmem:[#allocation2 + $0x148] sm:$0xff] %v471
    %536 = vst [vmem:[#allocation2 + $0x150] sm:$0xff] %v472
    %537 = vst [vmem:[#allocation2 + $0x158] sm:$0xff] %v473
    %538 = vst [vmem:[#allocation2 + $0x160] sm:$0xff] %v474
    %539 = vst [vmem:[#allocation2 + $0x168] sm:$0xff] %v475
    %540 = vst [vmem:[#allocation2 + $0x170] sm:$0xff] %v476
    %541 = vst [vmem:[#allocation2 + $0x178] sm:$0xff] %v477
    %542 = vst [vmem:[#allocation2 + $0x180] sm:$0xff] %v478
    %543 = vst [vmem:[#allocation2 + $0x188] sm:$0xff] %v479
    %544 = vst [vmem:[#allocation2 + $0x190] sm:$0xff] %v480
    %545 = vst [vmem:[#allocation2 + $0x198] sm:$0xff] %v481
    %546 = vst [vmem:[#allocation2 + $0x1a0] sm:$0xff] %v482
    %547 = vst [vmem:[#allocation2 + $0x1a8] sm:$0xff] %v483
    %548 = vst [vmem:[#allocation2 + $0x1b0] sm:$0xff] %v484
    %549 = vst [vmem:[#allocation2 + $0x1b8] sm:$0xff] %v485
    %550 = vst [vmem:[#allocation2 + $0x1c0] sm:$0xff] %v486
    %551 = vst [vmem:[#allocation2 + $0x1c8] sm:$0xff] %v487
    %552 = vst [vmem:[#allocation2 + $0x1d0] sm:$0xff] %v488
    %553 = vst [vmem:[#allocation2 + $0x1d8] sm:$0xff] %v489
    %554 = vst [vmem:[#allocation2 + $0x1e0] sm:$0xff] %v490
    %555 = vst [vmem:[#allocation2 + $0x1e8] sm:$0xff] %v491
    %556 = vst [vmem:[#allocation2 + $0x1f0] sm:$0xff] %v492
    %557 = vst [vmem:[#allocation2 + $0x1f8] sm:$0xff] %v493
    // Predicated region
    $region14: #{tpu_custom_call.1} parent=1 // pred_check
      _
    $region15: #{tpu_custom_call.1} parent=1 // pred_check_branch
      %559 = sbr.rel (0) target = $region17
    $region16: #{tpu_custom_call.1} parent=1 // pred_region
      %s561 = ssub.s32 8192, 8192
      %562 = vsyncadd [#allocation3], %s561
      %s563 = sshll.u32 [#allocation2], 4
      %s564 = int_to_ptr.vmem [resolvable:$true] %s563
      %569 = dma.vmem_to_hbm [thread:$0]  %s564, 8192, %s3, [#allocation3], 256, 256, 16
    $region17: #{tpu_custom_call.1} parent=1 // pred_fallthru
      _
    // Predicated region
    $region18: #{tpu_custom_call.1} parent=1 // pred_check
      _
    $region19: #{tpu_custom_call.1} parent=1 // pred_check_branch
      %571 = sbr.rel (0) target = $region21
    $region20: #{tpu_custom_call.1} parent=1 // pred_region
      %572 = dma.done [#allocation3], 8192
    $region21: #{tpu_custom_call.1} parent=1 // pred_fallthru
      _
    %573 = vsyncpa [#allocation3], 1

</llo_original>
